<compile_context>
chip_gen: v7x
topology: tpu7x:2x2x1
jax: 0.10.0
libtpu: 0.0.40
codegen_flags: <defaults>
</compile_context>

<pallas_src>
import math

import jax
import jax.numpy as jnp
from jax.experimental import pallas as pl
from jax.experimental.pallas import tpu as pltpu


def _split_kernel(x_ref, o0_ref, o1_ref):
    # x_ref: (TILE_M, 10) VMEM tile. Static lane slices straight from the ref
    # keep live ranges per-vreg (vld -> vst), no full-tile materialization.
    o0_ref[...] = x_ref[:, :5]
    o1_ref[...] = x_ref[:, 5:]


def _round_up(a, b):
    return (a + b - 1) // b * b


# ~24 MiB double-buffered working set at f32 (3 KiB/row: (tile,10)+2x(tile,5),
# lanes padded to 128). Safe inside a 48 MiB VMEM limit on every generation,
# including v7x's 64 MiB physical VMEM.
_MAX_TILE_ROWS = 8192


def split_section(x, *, small_threshold=16384):
    """Pallas equivalent of torch.split(x, [5, 5], dim=-1)."""
    assert x.shape[-1] == 10, "SplitSection expects last dim == 5 + 5"
    lead = x.shape[:-1]
    m = math.prod(lead) if lead else 1

    itemsize = jnp.dtype(x.dtype).itemsize
    # Sublane packing multiple: 8 rows for 4-byte, 16 for 2-byte, 32 for 1-byte.
    sub = max(8, 32 // itemsize)

    # Fast path: for small inputs the pallas_call is pure launch overhead and a
    # plain XLA slice fuses into producers/consumers.
    if m <= small_threshold or m < sub:
        return x[..., :5], x[..., 5:]

    x2d = x.reshape(m, 10)

    # Large tiles for pipelining / step-overhead amortization, but cap so the
    # grid has >= ~4 steps (v7x megacore sharding needs >= 2 blocks per TC) and
    # align to the sublane-packing multiple. Partial edge block handled by
    # Pallas; no wrapper pad/slice copies.
    tile = max(sub, min(_MAX_TILE_ROWS, _round_up(pl.cdiv(m, 4), sub)))
    grid = (pl.cdiv(m, tile),)

    # Pure copy: no flops; bytes = one read of (m,10) + two writes of (m,5).
    cost = pl.CostEstimate(
        flops=0,
        transcendentals=0,
        bytes_accessed=20 * m * itemsize,
    )

    out0, out1 = pl.pallas_call(
        _split_kernel,
        out_shape=(
            jax.ShapeDtypeStruct((m, 5), x.dtype),
            jax.ShapeDtypeStruct((m, 5), x.dtype),
        ),
        grid=grid,
        in_specs=[pl.BlockSpec((tile, 10), lambda i: (i, 0))],
        out_specs=(
            pl.BlockSpec((tile, 5), lambda i: (i, 0)),
            pl.BlockSpec((tile, 5), lambda i: (i, 0)),
        ),
        compiler_params=pltpu.CompilerParams(
            dimension_semantics=("parallel",),  # shard M across TCs on v7x
            vmem_limit_bytes=48 * 1024 * 1024,  # safe on v7x's 64 MiB VMEM
        ),
        cost_estimate=cost,
    )(x2d)

    return out0.reshape(lead + (5,)), out1.reshape(lead + (5,))


if __name__ == "__main__":
    key = jax.random.PRNGKey(0)

    # Small shape consistent with the module: last dim must be 10.
    x = jax.random.normal(key, (2, 4, 16, 10), dtype=jnp.float32)  # m = 128 rows

    # Force the Pallas path (the default fast path would hand this small shape
    # straight to XLA slices).
    y0, y1 = split_section(x, small_threshold=0)
    jax.block_until_ready((y0, y1))
    ref0, ref1 = x[..., :5], x[..., 5:]
    assert y0.shape == (2, 4, 16, 5) and y1.shape == (2, 4, 16, 5)
    assert jnp.array_equal(y0, ref0) and jnp.array_equal(y1, ref1)

    # Regression for the no-pad / pl.cdiv grid: m % tile != 0 (m = 136 rows),
    # verifies edge-block out-of-bounds writes are dropped correctly.
    xb = jax.random.normal(jax.random.PRNGKey(1), (2, 4, 17, 10), dtype=jnp.float32)
    z0, z1 = split_section(xb, small_threshold=0)
    jax.block_until_ready((z0, z1))
    assert jnp.array_equal(z0, xb[..., :5]) and jnp.array_equal(z1, xb[..., 5:])

    # Default fast path (small input -> plain XLA slices).
    w0, w1 = split_section(x)
    jax.block_until_ready((w0, w1))
    assert jnp.array_equal(w0, ref0) and jnp.array_equal(w1, ref1)

    print("KERNEL_OK")
</pallas_src>

<mosaic_0001>
module attributes {stable_mosaic.version = 11 : i64} {
  func.func @_split_kernel(%arg0: i32, %arg1: memref<32x10xf32, #tpu.memory_space<vmem>>, %arg2: memref<32x5xf32, #tpu.memory_space<vmem>>, %arg3: memref<32x5xf32, #tpu.memory_space<vmem>>) attributes {dimension_semantics = [#tpu.dimension_semantics<parallel>], iteration_bounds = array<i64: 4>, scalar_prefetch = 0 : i64, scratch_operands = 0 : i64, tpu.core_type = #tpu.core_type<tc>, window_params = [{transform_indices = @transform_0, window_bounds = array<i64: 32, 10>}, {transform_indices = @transform_1, window_bounds = array<i64: 32, 5>}, {transform_indices = @transform_2, window_bounds = array<i64: 32, 5>}]} {
    %c0 = arith.constant 0 : index
    %c0_0 = arith.constant 0 : index
    %0 = vector.load %arg1[%c0, %c0_0] : memref<32x10xf32, #tpu.memory_space<vmem>>, vector<32x5xf32>
    %c0_1 = arith.constant 0 : index
    %c0_2 = arith.constant 0 : index
    %1 = vector.load %arg2[%c0_1, %c0_2] : memref<32x5xf32, #tpu.memory_space<vmem>>, vector<32x5xf32>
    tpu.vector_store %arg2[%c0_1, %c0_2], %0 {strides = array<i32>} : memref<32x5xf32, #tpu.memory_space<vmem>>, vector<32x5xf32>,
    %c0_3 = arith.constant 0 : index
    %c5 = arith.constant 5 : index
    %2 = vector.load %arg1[%c0_3, %c5] : memref<32x10xf32, #tpu.memory_space<vmem>>, vector<32x5xf32>
    %c0_4 = arith.constant 0 : index
    %c0_5 = arith.constant 0 : index
    %3 = vector.load %arg3[%c0_4, %c0_5] : memref<32x5xf32, #tpu.memory_space<vmem>>, vector<32x5xf32>
    tpu.vector_store %arg3[%c0_4, %c0_5], %2 {strides = array<i32>} : memref<32x5xf32, #tpu.memory_space<vmem>>, vector<32x5xf32>,
    return
  }
  func.func @transform_0(%arg0: i32) -> (i32, i32) {
    %c0_i32 = arith.constant 0 : i32
    %c0_i32_0 = arith.constant 0 : i32
    return %arg0, %c0_i32 : i32, i32
  }
  func.func @transform_1(%arg0: i32) -> (i32, i32) {
    %c0_i32 = arith.constant 0 : i32
    %c0_i32_0 = arith.constant 0 : i32
    return %arg0, %c0_i32 : i32, i32
  }
  func.func @transform_2(%arg0: i32) -> (i32, i32) {
    %c0_i32 = arith.constant 0 : i32
    %c0_i32_0 = arith.constant 0 : i32
    return %arg0, %c0_i32 : i32, i32
  }
}

</mosaic_0001>

<llo_original>
// kernel: tpu_custom_call.1
$region0: #{tpu_custom_call.1}
  #allocation0 [shape = 'u32[]', space=smem, size = 0x4, offset = 0x4, fixed_abs, tag = 'smem constant byte address 0x4 - core index']
  #allocation1 [shape = 'u32[144,128]{1,0:T(1,128)}', space=vmem, size = 0x12000, scoped, tag = 'internal scratch']
  %s0 = inlined_call_operand.vmem [shape: f32[128,10], index: 0, kind: input, shape index: {}]
  %s1 = inlined_call_operand.vmem [shape: f32[128,5], index: 1, kind: output, shape index: {0}]
  %s2 = inlined_call_operand.vmem [shape: f32[128,5], index: 2, kind: output, shape index: {1}]
  %3 = xla_tuple %s1, %s2
  %s4 = sld [smem:[#allocation0]]
  $region45: #{tpu_custom_call.1} parent=0
    _
  %s6 = ssub.s32 1, %s4
  %s7 = scalar_select 0, %s6, %s4
  loop: start=0, step=1, limit=6
  $region2: #{tpu_custom_call.1} parent=0 // loop_pre_header
    _
  $region3: #{tpu_custom_call.1} parent=0 // loop_header
    %s9 = sphi 0, %s13
    %p10 = scmp.ge.s32.totalorder %s9, 6
    %s19 = sphi 0, %s21
    %s22 = sphi 0, %s19
    %s23 = sphi 0, %s22
    %s39 = sphi 0, %s23
    %s45 = sphi 0, %s47
    %s48 = sphi 0, %s45
    %s49 = sphi 0, %s48
    %s65 = sphi 0, %s49
    %s71 = sphi 0, %s73
    %s74 = sphi 0, %s71
    %s75 = sphi 0, %s74
    %s91 = sphi 0, %s75
  $region4: #{tpu_custom_call.1} parent=0 // loop_header_branch
    %12 = sbr.rel (%p10) target = $region8
  $region5: #{tpu_custom_call.1} parent=0 // loop_body
    %s14 = ssub.s32 %s9, 1
    %s15 = ssub.s32 %s9, 2
    %s16 = sadd.s32 %s9, 1
    %s17 = ssub.s32 %s9, %s16
    %p18 = scmp.eq.s32.totalorder %s17, 0
    %s20 = sadd.s32 %s19, 1
    %s21 = scalar_select %p18, %s19, %s20
    %p24 = pneg %p18
    %p25 = scmp.eq.s32.totalorder %s9, 3
    %p26 = por %p24, %p25
    %p27 = scmp.ne.s32.totalorder %s19, %s22
    %p28 = scmp.eq.s32.totalorder %s9, 0
    %p29 = por %p27, %p28
    %p30 = scmp.ne.s32.totalorder %s19, %s22
    %p31 = scmp.eq.s32.totalorder %s14, 3
    %p32 = por %p30, %p31
    %p33 = scmp.ne.s32.totalorder %s22, %s23
    %p34 = scmp.eq.s32.totalorder %s14, 0
    %p35 = por %p33, %p34
    %p36 = scmp.ne.s32.totalorder %s22, %s23
    %p37 = scmp.eq.s32.totalorder %s15, 3
    %p38 = por %p36, %p37
    %p40 = scmp.ne.s32.totalorder %s23, %s39
    %p41 = scmp.eq.s32.totalorder %s15, 0
    %p42 = por %p40, %p41
    %s43 = ssub.s32 %s9, %s16
    %p44 = scmp.eq.s32.totalorder %s43, 0
    %s46 = sadd.s32 %s45, 1
    %s47 = scalar_select %p44, %s45, %s46
    %p50 = pneg %p44
    %p51 = scmp.eq.s32.totalorder %s9, 3
    %p52 = por %p50, %p51
    %p53 = scmp.ne.s32.totalorder %s45, %s48
    %p54 = scmp.eq.s32.totalorder %s9, 0
    %p55 = por %p53, %p54
    %p56 = scmp.ne.s32.totalorder %s45, %s48
    %p57 = scmp.eq.s32.totalorder %s14, 3
    %p58 = por %p56, %p57
    %p59 = scmp.ne.s32.totalorder %s48, %s49
    %p60 = scmp.eq.s32.totalorder %s14, 0
    %p61 = por %p59, %p60
    %p62 = scmp.ne.s32.totalorder %s48, %s49
    %p63 = scmp.eq.s32.totalorder %s15, 3
    %p64 = por %p62, %p63
    %p66 = scmp.ne.s32.totalorder %s49, %s65
    %p67 = scmp.eq.s32.totalorder %s15, 0
    %p68 = por %p66, %p67
    %s69 = ssub.s32 %s9, %s16
    %p70 = scmp.eq.s32.totalorder %s69, 0
    %s72 = sadd.s32 %s71, 1
    %s73 = scalar_select %p70, %s71, %s72
    %p76 = pneg %p70
    %p77 = scmp.eq.s32.totalorder %s9, 3
    %p78 = por %p76, %p77
    %p79 = scmp.ne.s32.totalorder %s71, %s74
    %p80 = scmp.eq.s32.totalorder %s9, 0
    %p81 = por %p79, %p80
    %p82 = scmp.ne.s32.totalorder %s71, %s74
    %p83 = scmp.eq.s32.totalorder %s14, 3
    %p84 = por %p82, %p83
    %p85 = scmp.ne.s32.totalorder %s74, %s75
    %p86 = scmp.eq.s32.totalorder %s14, 0
    %p87 = por %p85, %p86
    %p88 = scmp.ne.s32.totalorder %s74, %s75
    %p89 = scmp.eq.s32.totalorder %s15, 3
    %p90 = por %p88, %p89
    %p92 = scmp.ne.s32.totalorder %s75, %s91
    %p93 = scmp.eq.s32.totalorder %s15, 0
    %p94 = por %p92, %p93
    %p95 = scmp.le.s32.totalorder 1, %s9
    %p96 = scmp.lt.s32.totalorder %s9, 5
    %p97 = pnand %p95, %p96
    %p98 = pneg %p97
    // Predicated region
    $region9: #{tpu_custom_call.1} parent=5 // pred_check
      _
    $region10: #{tpu_custom_call.1} parent=5 // pred_check_branch
      %100 = sbr.rel (%p97) target = $region12
    $region11: #{tpu_custom_call.1} parent=5 // pred_region
      %s101 = ssub.s32 %s9, 1
    $region12: #{tpu_custom_call.1} parent=5 // pred_fallthru
      _
    %p102 = scmp.lt.s32.totalorder %s9, 4
    // Predicated region
    $region13: #{tpu_custom_call.1} parent=5 // pred_check
      %p103 = pneg %p102
    $region14: #{tpu_custom_call.1} parent=5 // pred_check_branch
      %105 = sbr.rel (%p103) target = $region16
    $region15: #{tpu_custom_call.1} parent=5 // pred_region
      // Predicated region
      $region17: #{tpu_custom_call.1} parent=15 // pred_check
        %p106 = pneg %p29
      $region18: #{tpu_custom_call.1} parent=15 // pred_check_branch
        %108 = sbr.rel (%p106) target = $region20
      $region19: #{tpu_custom_call.1} parent=15 // pred_region
        %s109 = smul.u32 4, %s9
        %p110 = scmp.lt.s32.totalorder %s109, 15
        %s111 = scalar_select %p110, %s109, 15
        %s112 = smul.addr %s111, 8
        %s113 = scalar_lea.vmem %s0, %s112
        %s114 = smul.u32 4, %s9
      $region20: #{tpu_custom_call.1} parent=15 // pred_fallthru
        _
    $region16: #{tpu_custom_call.1} parent=5 // pred_fallthru
      _
    %p115 = scmp.le.s32.totalorder 1, %s9
    %p116 = scmp.lt.s32.totalorder %s9, 5
    %p117 = pnand %p115, %p116
    %p118 = pneg %p117
    // Predicated region
    $region21: #{tpu_custom_call.1} parent=5 // pred_check
      _
    $region22: #{tpu_custom_call.1} parent=5 // pred_check_branch
      %120 = sbr.rel (%p117) target = $region24
    $region23: #{tpu_custom_call.1} parent=5 // pred_region
      %s121 = ssub.s32 %s9, 1
      %s122 = smul.u32 4, %s14
      %p123 = scmp.lt.s32.totalorder %s122, 15
      %s124 = scalar_select %p123, %s122, 15
      %s125 = smul.addr %s124, 8
      %s126 = scalar_lea.vmem %s0, %s125
      %p127 = pneg %p35
      %p128 = pneg %p32
      %p129 = pneg %p61
      %p130 = pneg %p58
      %s131 = smul.u32 4, %s14
      %p132 = scmp.lt.s32.totalorder %s131, 15
      %s133 = scalar_select %p132, %s131, 15
      %s134 = smul.addr %s133, 8
      %s135 = scalar_lea.vmem %s1, %s134
      %p136 = pneg %p87
      %p137 = pneg %p84
      %s138 = smul.u32 4, %s14
      %p139 = scmp.lt.s32.totalorder %s138, 15
      %s140 = scalar_select %p139, %s138, 15
      %s141 = smul.addr %s140, 8
      %s142 = scalar_lea.vmem %s2, %s141
      %s143 = smul.u32 4, %s14
      %p144 = scmp.lt.s32.totalorder %s143, 15
      %s145 = scalar_select %p144, %s143, 15
      %s146 = smul.addr %s145, 8
      %s147 = scalar_lea.vmem %s0, %s146
      %s148 = smul.u32 4, %s14
      %s149 = smul.u32 4, %s14
      %p150 = scmp.lt.s32.totalorder %s149, 15
      %s151 = scalar_select %p150, %s149, 15
      %s152 = smul.addr %s151, 8
      %s153 = scalar_lea.vmem %s1, %s152
      %s154 = smul.u32 4, %s14
      %s155 = smul.u32 4, %s14
      %p156 = scmp.lt.s32.totalorder %s155, 15
      %s157 = scalar_select %p156, %s155, 15
      %s158 = smul.addr %s157, 8
      %s159 = scalar_lea.vmem %s2, %s158
      %s160 = smul.u32 4, %s14
      %v161 = vld [vmem:[%s147] sm:$0xff]
      %v162 = vld [vmem:[%s147 + $0x8] sm:$0xff]
      %v163 = vld [vmem:[%s147 + $0x10] sm:$0xff]
      %v164 = vld [vmem:[%s147 + $0x18] sm:$0xff]
      %vm165 = vcmask 39936
      %166 = vst.msk [vmem:[%s153] sm:$0xff] %vm165, %v161
      %167 = vst.msk [vmem:[%s153 + $0x8] sm:$0xff] %vm165, %v162
      %168 = vst.msk [vmem:[%s153 + $0x10] sm:$0xff] %vm165, %v163
      %169 = vst.msk [vmem:[%s153 + $0x18] sm:$0xff] %vm165, %v164
      %v170 = vld [vmem:[%s147] sm:$0xff]
      %v171 = vld [vmem:[%s147 + $0x8] sm:$0xff]
      %v172 = vld [vmem:[%s147 + $0x10] sm:$0xff]
      %v173 = vld [vmem:[%s147 + $0x18] sm:$0xff]
      %178 = vrot.lane.b32.xlu0 %v170, 123
      %v179 = vpop.permute.xlu0 %178
      %180 = vrot.lane.b32.xlu0 %v171, 123
      %v181 = vpop.permute.xlu0 %180
      %182 = vrot.lane.b32.xlu0 %v172, 123
      %v183 = vpop.permute.xlu0 %182
      %184 = vrot.lane.b32.xlu0 %v173, 123
      %v185 = vpop.permute.xlu0 %184
      %190 = vst.msk [vmem:[%s159] sm:$0xff] %vm165, %v179
      %191 = vst.msk [vmem:[%s159 + $0x8] sm:$0xff] %vm165, %v181
      %192 = vst.msk [vmem:[%s159 + $0x10] sm:$0xff] %vm165, %v183
      %193 = vst.msk [vmem:[%s159 + $0x18] sm:$0xff] %vm165, %v185
      %s194 = smul.u32 4, %s14
      %p195 = scmp.lt.s32.totalorder %s194, 15
      %s196 = scalar_select %p195, %s194, 15
      %s197 = smul.addr %s196, 8
      %s198 = scalar_lea.vmem %s1, %s197
      %s199 = smul.u32 4, %s14
      %p200 = scmp.lt.s32.totalorder %s199, 15
      %s201 = scalar_select %p200, %s199, 15
      %s202 = smul.addr %s201, 8
      %s203 = scalar_lea.vmem %s2, %s202
      // Predicated region
      $region25: #{tpu_custom_call.1} parent=23 // pred_check
        %p204 = pneg %p58
      $region26: #{tpu_custom_call.1} parent=23 // pred_check_branch
        %206 = sbr.rel (%p204) target = $region28
      $region27: #{tpu_custom_call.1} parent=23 // pred_region
        %s207 = smul.u32 4, %s14
      $region28: #{tpu_custom_call.1} parent=23 // pred_fallthru
        _
      // Predicated region
      $region29: #{tpu_custom_call.1} parent=23 // pred_check
        %p208 = pneg %p84
      $region30: #{tpu_custom_call.1} parent=23 // pred_check_branch
        %210 = sbr.rel (%p208) target = $region32
      $region31: #{tpu_custom_call.1} parent=23 // pred_region
        %s211 = smul.u32 4, %s14
      $region32: #{tpu_custom_call.1} parent=23 // pred_fallthru
        _
    $region24: #{tpu_custom_call.1} parent=5 // pred_fallthru
      _
    %p212 = scmp.le.s32.totalorder 2, %s9
    // Predicated region
    $region33: #{tpu_custom_call.1} parent=5 // pred_check
      %p213 = pneg %p212
    $region34: #{tpu_custom_call.1} parent=5 // pred_check_branch
      %215 = sbr.rel (%p213) target = $region36
    $region35: #{tpu_custom_call.1} parent=5 // pred_region
      %s216 = ssub.s32 %s9, 2
      // Predicated region
      $region37: #{tpu_custom_call.1} parent=35 // pred_check
        %p217 = pneg %p64
      $region38: #{tpu_custom_call.1} parent=35 // pred_check_branch
        %219 = sbr.rel (%p217) target = $region40
      $region39: #{tpu_custom_call.1} parent=35 // pred_region
        %s220 = smul.u32 4, %s15
        %p221 = scmp.lt.s32.totalorder %s220, 15
        %s222 = scalar_select %p221, %s220, 15
        %s223 = smul.addr %s222, 8
        %s224 = scalar_lea.vmem %s1, %s223
      $region40: #{tpu_custom_call.1} parent=35 // pred_fallthru
        _
      // Predicated region
      $region41: #{tpu_custom_call.1} parent=35 // pred_check
        %p225 = pneg %p90
      $region42: #{tpu_custom_call.1} parent=35 // pred_check_branch
        %227 = sbr.rel (%p225) target = $region44
      $region43: #{tpu_custom_call.1} parent=35 // pred_region
        %s228 = smul.u32 4, %s15
        %p229 = scmp.lt.s32.totalorder %s228, 15
        %s230 = scalar_select %p229, %s228, 15
        %s231 = smul.addr %s230, 8
        %s232 = scalar_lea.vmem %s2, %s231
      $region44: #{tpu_custom_call.1} parent=35 // pred_fallthru
        _
    $region36: #{tpu_custom_call.1} parent=5 // pred_fallthru
      _
  $region6: #{tpu_custom_call.1} parent=0 // loop_footer
    %s13 = sadd.s32 1, %s9
  $region7: #{tpu_custom_call.1} parent=0 // loop_footer_branch
    %8 = sbr.rel target = $region3
  $region8: #{tpu_custom_call.1} parent=0 // loop_exit
    _

</llo_original>
